<compile_context>
chip_gen: v6e
topology: v6e:2x2x1
jax: 0.10.0
libtpu: 0.0.40
codegen_flags: <defaults>
</compile_context>

<pallas_src>
import functools

import jax
import jax.numpy as jnp
from jax.experimental import pallas as pl
from jax.experimental.pallas import tpu as pltpu


def _round_up(x, m):
    return ((x + m - 1) // m) * m


# ----------------------------------------------------------------------------
# Pallas kernel: fused 3x3 conv (single K=9*C_in dot) -> ReLU -> 1x1 conv
#                -> sigmoid, written lane-dense as (num_classes, pixel_tile)
# ----------------------------------------------------------------------------
def _onlysup_kernel(x_ref, w1_ref, b1_ref, w2_ref, b2_ref, o_ref, stack_ref, *,
                    tap_offsets, tile_cols, halo):
    # x_ref    : (1, C_in, P_in)      zero-padded flattened image, bf16 (resident/batch)
    # w1_ref   : (hidden, 9*C_in)     conv3x3 weights packed for one dot, bf16
    # b1_ref   : (hidden, 1)          f32
    # w2_ref   : (C, hidden)          conv1x1 classifier, bf16
    # b2_ref   : (C, 1)               f32
    # o_ref    : (1, C, tile_cols)    f32 probabilities, lane-dense (NC(HW) layout)
    # stack_ref: (9*C_in, tile_cols)  f32 scratch holding the 9 shifted tap slices
    c_in = x_ref.shape[1]
    j = pl.program_id(1)
    col0 = pl.multiple_of(j * tile_cols, 128)
    # One 128-aligned dynamic-start load of this tile's window (+ exact right halo).
    xwin = x_ref[0, :, pl.ds(col0, tile_cols + halo)]               # (C_in, TM+halo)

    # Stack the 9 statically shifted lane-slices into (9*C_in, TM) so the whole
    # 3x3 conv is a single K=9*C_in MXU dot (accumulation stays on the MXU).
    for t, off in enumerate(tap_offsets):                           # 9 static taps
        stack_ref[pl.ds(t * c_in, c_in), :] = (
            xwin[:, off:off + tile_cols].astype(jnp.float32))

    acc = jnp.dot(w1_ref[...], stack_ref[...].astype(jnp.bfloat16),
                  preferred_element_type=jnp.float32)                # (hidden, TM) f32
    h = jnp.maximum(acc + b1_ref[...], 0.0).astype(jnp.bfloat16)     # bias + ReLU
    logit = jnp.dot(w2_ref[...], h,
                    preferred_element_type=jnp.float32) + b2_ref[...]
    o_ref[0] = jax.nn.sigmoid(logit).astype(o_ref.dtype)             # prob


# ----------------------------------------------------------------------------
# Wrapper: layout plumbing only (single bf16 pad + flatten); emits NCHW directly
# ----------------------------------------------------------------------------
def onlysup_forward(image_nchw, params, *, tile_cols=1024):
    """Equivalent of OnlySup.forward: prob = model(image). Output is NCHW."""
    N, C_in, H, W = image_nchw.shape
    w1, b1, w2, b2 = params["w1"], params["b1"], params["w2"], params["b2"]
    hidden = w1.shape[1]
    C = w2.shape[0]

    Wp = W + 2                                   # padded row width
    m_out = H * Wp                               # flat columns covering all pixels
    tm = _round_up(min(tile_cols, _round_up(m_out, 128)), 128)
    n_ct = pl.cdiv(m_out, tm)                    # column tiles per batch element
    m_pad = n_ct * tm
    halo = 2 * Wp + 2                            # max tap offset (dh=dw=2) = 2W+6

    # Single merged pad (cast to bf16 FIRST): 'same' zero pad on H/W plus enough
    # extra zero rows that the flattened axis covers every tile's load window.
    base_cols = (H + 2) * Wp
    extra_rows = max(0, -(-(m_pad + halo - base_cols) // Wp))        # ceil-div, >= 0
    p_in = (H + 2 + extra_rows) * Wp
    xp = jnp.pad(image_nchw.astype(jnp.bfloat16),
                 ((0, 0), (0, 0), (1, 1 + extra_rows), (1, 1)))      # (N,C_in,H+2+e,Wp)
    flat = xp.reshape(N, C_in, p_in)

    # Pack conv3x3 weights once: column t*C_in + c  <->  tap t, input channel c.
    w1_packed = (jnp.transpose(w1, (1, 0, 2))
                 .reshape(hidden, 9 * C_in).astype(jnp.bfloat16))

    # tap (dh, dw) of the 3x3 window -> flat lane offset dh*Wp + dw
    tap_offsets = tuple(dh * Wp + dw for dh in range(3) for dw in range(3))
    kernel = functools.partial(_onlysup_kernel, tap_offsets=tap_offsets,
                               tile_cols=tm, halo=halo)

    # VMEM budget from the actual slab / tile sizes (slab is double-buffered).
    vmem_need = (2 * C_in * p_in * 2            # bf16 image slab x2
                 + 2 * C * tm * 4               # f32 output tile x2
                 + 9 * C_in * tm * 4            # f32 stacking scratch
                 + 4 * 1024 * 1024)             # weights + temporaries headroom
    vmem_limit = int(min(112 * 2**20, max(32 * 2**20, 2 * vmem_need)))

    out = pl.pallas_call(
        kernel,
        out_shape=jax.ShapeDtypeStruct((N, C, m_pad), jnp.float32),
        grid_spec=pltpu.PrefetchScalarGridSpec(
            num_scalar_prefetch=0,
            grid=(N, n_ct),
            in_specs=[
                # image slab: re-fetched only when the batch index changes
                pl.BlockSpec((1, C_in, p_in), lambda b, j: (b, 0, 0)),
                pl.BlockSpec((hidden, 9 * C_in), lambda b, j: (0, 0)),  # w1 packed
                pl.BlockSpec((hidden, 1), lambda b, j: (0, 0)),         # b1
                pl.BlockSpec((C, hidden), lambda b, j: (0, 0)),         # w2
                pl.BlockSpec((C, 1), lambda b, j: (0, 0)),              # b2
            ],
            out_specs=pl.BlockSpec((1, C, tm), lambda b, j: (b, 0, j)),
            scratch_shapes=[pltpu.VMEM((9 * C_in, tm), jnp.float32)],
        ),
        compiler_params=pltpu.CompilerParams(
            # Megacore shards on the batch axis only, so each TensorCore keeps a
            # single image slab resident; the pixel-tile axis iterates serially.
            dimension_semantics=("parallel", "arbitrary"),
            vmem_limit_bytes=vmem_limit),
    )(flat, w1_packed, b1, w2.astype(jnp.bfloat16), b2)

    # column j = h*Wp + w holds pixel (h, w) for w < W; drop padded/garbage cols.
    prob = out[:, :, :m_out].reshape(N, C, H, Wp)[:, :, :, :W]
    return prob                                   # (N, num_classes, H, W) -- NCHW


# ----------------------------------------------------------------------------
# Deterministic parameter init (synthetic "CreateModel") + pure-JAX reference
# ----------------------------------------------------------------------------
def init_params(key, c_in, hidden, num_classes):
    k1, k2 = jax.random.split(key)
    # w1[t] == conv3x3 weight[:, :, t // 3, t % 3], shape (hidden, c_in)
    w1 = jax.random.normal(k1, (9, hidden, c_in), jnp.float32) * 0.1
    b1 = jnp.zeros((hidden, 1), jnp.float32)
    w2 = jax.random.normal(k2, (num_classes, hidden), jnp.float32) * 0.1
    b2 = jnp.zeros((num_classes, 1), jnp.float32)
    return {"w1": w1, "b1": b1, "w2": w2, "b2": b2}


def _reference_forward(image_nchw, params):
    w1, b1, w2, b2 = params["w1"], params["b1"], params["w2"], params["b2"]
    hidden, c_in = w1.shape[1], w1.shape[2]
    w_conv = jnp.transpose(w1.reshape(3, 3, hidden, c_in), (2, 3, 0, 1))   # OIHW
    feat = jax.lax.conv_general_dilated(
        image_nchw, w_conv, window_strides=(1, 1), padding="SAME",
        dimension_numbers=("NCHW", "OIHW", "NCHW"))
    feat = jnp.maximum(feat + b1.reshape(1, hidden, 1, 1), 0.0)
    logit = jnp.einsum("nchw,kc->nkhw", feat, w2) + b2.reshape(1, -1, 1, 1)
    return jax.nn.sigmoid(logit)


if __name__ == "__main__":
    # Small shapes consistent with a segmentation forward pass.
    N, C_in, H, W = 2, 4, 16, 16
    hidden, num_classes = 32, 4

    key = jax.random.PRNGKey(0)
    k_img, k_par = jax.random.split(key)
    image = jax.random.normal(k_img, (N, C_in, H, W), jnp.float32)
    params = init_params(k_par, C_in, hidden, num_classes)

    fwd = jax.jit(functools.partial(onlysup_forward, params=params))
    prob = fwd(image)
    jax.block_until_ready(prob)

    # sanity: shape, range, and agreement with a pure-JAX reference
    assert prob.shape == (N, num_classes, H, W)
    assert bool(jnp.all((prob >= 0.0) & (prob <= 1.0)))
    ref = _reference_forward(image, params)
    max_err = float(jnp.max(jnp.abs(prob - ref)))
    assert max_err < 2e-2, f"mismatch vs reference: {max_err}"   # bf16 streaming tol

    print("KERNEL_OK")
</pallas_src>

<mosaic_0001>
module attributes {stable_mosaic.version = 11 : i64} {
  func.func @_onlysup_kernel(%arg0: i32, %arg1: i32, %arg2: memref<1x4x432xbf16, #tpu.memory_space<vmem>>, %arg3: memref<32x36xbf16, #tpu.memory_space<vmem>>, %arg4: memref<32x1xf32, #tpu.memory_space<vmem>>, %arg5: memref<4x32xbf16, #tpu.memory_space<vmem>>, %arg6: memref<4x1xf32, #tpu.memory_space<vmem>>, %arg7: memref<1x4x384xf32, #tpu.memory_space<vmem>>, %arg8: memref<36x384xf32, #tpu.memory_space<vmem>>) attributes {dimension_semantics = [#tpu.dimension_semantics<parallel>, #tpu.dimension_semantics<arbitrary>], iteration_bounds = array<i64: 2, 1>, scalar_prefetch = 0 : i64, scratch_operands = 1 : i64, tpu.core_type = #tpu.core_type<tc>, window_params = [{transform_indices = @transform_0, window_bounds = array<i64: 1, 4, 432>}, {pipeline_mode = #tpu.pipeline_mode<synchronous>, transform_indices = @transform_1, window_bounds = array<i64: 32, 36>}, {pipeline_mode = #tpu.pipeline_mode<synchronous>, transform_indices = @transform_2, window_bounds = array<i64: 32, 1>}, {pipeline_mode = #tpu.pipeline_mode<synchronous>, transform_indices = @transform_3, window_bounds = array<i64: 4, 32>}, {pipeline_mode = #tpu.pipeline_mode<synchronous>, transform_indices = @transform_4, window_bounds = array<i64: 4, 1>}, {transform_indices = @transform_5, window_bounds = array<i64: 1, 4, 384>}]} {
    %c384_i32 = arith.constant 384 : i32
    %0 = arith.muli %arg1, %c384_i32 : i32
    %1 = tpu.assume_multiple %0, 128 : i32
    %c0 = arith.constant 0 : index
    %c0_0 = arith.constant 0 : index
    %2 = arith.index_cast %1 : i32 to index
    %3 = vector.load %arg2[%c0, %c0_0, %2] : memref<1x4x432xbf16, #tpu.memory_space<vmem>>, vector<1x4x422xbf16>
    %4 = vector.shape_cast %3 : vector<1x4x422xbf16> to vector<4x422xbf16>
    %5 = vector.extract_strided_slice %4 {offsets = [0, 0], sizes = [4, 384], strides = [1, 1]} : vector<4x422xbf16> to vector<4x384xbf16>
    %6 = arith.extf %5 : vector<4x384xbf16> to vector<4x384xf32>
    %c0_1 = arith.constant 0 : index
    %c0_2 = arith.constant 0 : index
    %7 = vector.load %arg8[%c0_1, %c0_2] : memref<36x384xf32, #tpu.memory_space<vmem>>, vector<4x384xf32>
    tpu.vector_store %arg8[%c0_1, %c0_2], %6 {strides = array<i32>} : memref<36x384xf32, #tpu.memory_space<vmem>>, vector<4x384xf32>,
    %8 = vector.extract_strided_slice %4 {offsets = [0, 1], sizes = [4, 384], strides = [1, 1]} : vector<4x422xbf16> to vector<4x384xbf16>
    %9 = arith.extf %8 : vector<4x384xbf16> to vector<4x384xf32>
    %c4 = arith.constant 4 : index
    %c0_3 = arith.constant 0 : index
    %10 = vector.load %arg8[%c4, %c0_3] : memref<36x384xf32, #tpu.memory_space<vmem>>, vector<4x384xf32>
    tpu.vector_store %arg8[%c4, %c0_3], %9 {strides = array<i32>} : memref<36x384xf32, #tpu.memory_space<vmem>>, vector<4x384xf32>,
    %11 = vector.extract_strided_slice %4 {offsets = [0, 2], sizes = [4, 384], strides = [1, 1]} : vector<4x422xbf16> to vector<4x384xbf16>
    %12 = arith.extf %11 : vector<4x384xbf16> to vector<4x384xf32>
    %c8 = arith.constant 8 : index
    %c0_4 = arith.constant 0 : index
    %13 = vector.load %arg8[%c8, %c0_4] : memref<36x384xf32, #tpu.memory_space<vmem>>, vector<4x384xf32>
    tpu.vector_store %arg8[%c8, %c0_4], %12 {strides = array<i32>} : memref<36x384xf32, #tpu.memory_space<vmem>>, vector<4x384xf32>,
    %14 = vector.extract_strided_slice %4 {offsets = [0, 18], sizes = [4, 384], strides = [1, 1]} : vector<4x422xbf16> to vector<4x384xbf16>
    %15 = arith.extf %14 : vector<4x384xbf16> to vector<4x384xf32>
    %c12 = arith.constant 12 : index
    %c0_5 = arith.constant 0 : index
    %16 = vector.load %arg8[%c12, %c0_5] : memref<36x384xf32, #tpu.memory_space<vmem>>, vector<4x384xf32>
    tpu.vector_store %arg8[%c12, %c0_5], %15 {strides = array<i32>} : memref<36x384xf32, #tpu.memory_space<vmem>>, vector<4x384xf32>,
    %17 = vector.extract_strided_slice %4 {offsets = [0, 19], sizes = [4, 384], strides = [1, 1]} : vector<4x422xbf16> to vector<4x384xbf16>
    %18 = arith.extf %17 : vector<4x384xbf16> to vector<4x384xf32>
    %c16 = arith.constant 16 : index
    %c0_6 = arith.constant 0 : index
    %19 = vector.load %arg8[%c16, %c0_6] : memref<36x384xf32, #tpu.memory_space<vmem>>, vector<4x384xf32>
    tpu.vector_store %arg8[%c16, %c0_6], %18 {strides = array<i32>} : memref<36x384xf32, #tpu.memory_space<vmem>>, vector<4x384xf32>,
    %20 = vector.extract_strided_slice %4 {offsets = [0, 20], sizes = [4, 384], strides = [1, 1]} : vector<4x422xbf16> to vector<4x384xbf16>
    %21 = arith.extf %20 : vector<4x384xbf16> to vector<4x384xf32>
    %c20 = arith.constant 20 : index
    %c0_7 = arith.constant 0 : index
    %22 = vector.load %arg8[%c20, %c0_7] : memref<36x384xf32, #tpu.memory_space<vmem>>, vector<4x384xf32>
    tpu.vector_store %arg8[%c20, %c0_7], %21 {strides = array<i32>} : memref<36x384xf32, #tpu.memory_space<vmem>>, vector<4x384xf32>,
    %23 = vector.extract_strided_slice %4 {offsets = [0, 36], sizes = [4, 384], strides = [1, 1]} : vector<4x422xbf16> to vector<4x384xbf16>
    %24 = arith.extf %23 : vector<4x384xbf16> to vector<4x384xf32>
    %c24 = arith.constant 24 : index
    %c0_8 = arith.constant 0 : index
    %25 = vector.load %arg8[%c24, %c0_8] : memref<36x384xf32, #tpu.memory_space<vmem>>, vector<4x384xf32>
    tpu.vector_store %arg8[%c24, %c0_8], %24 {strides = array<i32>} : memref<36x384xf32, #tpu.memory_space<vmem>>, vector<4x384xf32>,
    %26 = vector.extract_strided_slice %4 {offsets = [0, 37], sizes = [4, 384], strides = [1, 1]} : vector<4x422xbf16> to vector<4x384xbf16>
    %27 = arith.extf %26 : vector<4x384xbf16> to vector<4x384xf32>
    %c28 = arith.constant 28 : index
    %c0_9 = arith.constant 0 : index
    %28 = vector.load %arg8[%c28, %c0_9] : memref<36x384xf32, #tpu.memory_space<vmem>>, vector<4x384xf32>
    tpu.vector_store %arg8[%c28, %c0_9], %27 {strides = array<i32>} : memref<36x384xf32, #tpu.memory_space<vmem>>, vector<4x384xf32>,
    %29 = vector.extract_strided_slice %4 {offsets = [0, 38], sizes = [4, 384], strides = [1, 1]} : vector<4x422xbf16> to vector<4x384xbf16>
    %30 = arith.extf %29 : vector<4x384xbf16> to vector<4x384xf32>
    %c32 = arith.constant 32 : index
    %c0_10 = arith.constant 0 : index
    %31 = vector.load %arg8[%c32, %c0_10] : memref<36x384xf32, #tpu.memory_space<vmem>>, vector<4x384xf32>
    tpu.vector_store %arg8[%c32, %c0_10], %30 {strides = array<i32>} : memref<36x384xf32, #tpu.memory_space<vmem>>, vector<4x384xf32>,
    %c0_11 = arith.constant 0 : index
    %c0_12 = arith.constant 0 : index
    %32 = vector.load %arg3[%c0_11, %c0_12] : memref<32x36xbf16, #tpu.memory_space<vmem>>, vector<32x36xbf16>
    %c0_13 = arith.constant 0 : index
    %c0_14 = arith.constant 0 : index
    %33 = vector.load %arg8[%c0_13, %c0_14] : memref<36x384xf32, #tpu.memory_space<vmem>>, vector<36x384xf32>
    %34 = arith.truncf %33 : vector<36x384xf32> to vector<36x384xbf16>
    %cst = arith.constant dense<0.000000e+00> : vector<32x384xf32>
    %35 = tpu.matmul %32, %34, %cst {dimension_numbers = #tpu.dot_dimension_numbers<[1], [0], [0], [1], [0, 0, 1, 1], [], []>} : vector<32x36xbf16>, vector<36x384xbf16>, vector<32x384xf32> -> vector<32x384xf32>
    %c0_15 = arith.constant 0 : index
    %c0_16 = arith.constant 0 : index
    %36 = vector.load %arg4[%c0_15, %c0_16] : memref<32x1xf32, #tpu.memory_space<vmem>>, vector<32x1xf32>
    %37 = vector.broadcast %36 : vector<32x1xf32> to vector<32x384xf32>
    %38 = arith.addf %35, %37 : vector<32x384xf32>
    %cst_17 = arith.constant 0.000000e+00 : f32
    %39 = vector.broadcast %cst_17 : f32 to vector<32x384xf32>
    %40 = arith.maximumf %38, %39 : vector<32x384xf32>
    %41 = arith.truncf %40 : vector<32x384xf32> to vector<32x384xbf16>
    %c0_18 = arith.constant 0 : index
    %c0_19 = arith.constant 0 : index
    %42 = vector.load %arg5[%c0_18, %c0_19] : memref<4x32xbf16, #tpu.memory_space<vmem>>, vector<4x32xbf16>
    %cst_20 = arith.constant dense<0.000000e+00> : vector<4x384xf32>
    %43 = tpu.matmul %42, %41, %cst_20 {dimension_numbers = #tpu.dot_dimension_numbers<[1], [0], [0], [1], [0, 0, 1, 1], [], []>} : vector<4x32xbf16>, vector<32x384xbf16>, vector<4x384xf32> -> vector<4x384xf32>
    %c0_21 = arith.constant 0 : index
    %c0_22 = arith.constant 0 : index
    %44 = vector.load %arg6[%c0_21, %c0_22] : memref<4x1xf32, #tpu.memory_space<vmem>>, vector<4x1xf32>
    %45 = vector.broadcast %44 : vector<4x1xf32> to vector<4x384xf32>
    %46 = arith.addf %43, %45 : vector<4x384xf32>
    %47 = arith.negf %46 : vector<4x384xf32>
    %48 = math.exp %47 : vector<4x384xf32>
    %cst_23 = arith.constant 1.000000e+00 : f32
    %49 = vector.broadcast %cst_23 : f32 to vector<4x384xf32>
    %50 = arith.addf %49, %48 : vector<4x384xf32>
    %51 = arith.divf %49, %50 : vector<4x384xf32>
    %c0_24 = arith.constant 0 : index
    %c0_25 = arith.constant 0 : index
    %c0_26 = arith.constant 0 : index
    %52 = vector.load %arg7[%c0_24, %c0_25, %c0_26] : memref<1x4x384xf32, #tpu.memory_space<vmem>>, vector<1x4x384xf32>
    %53 = vector.shape_cast %52 : vector<1x4x384xf32> to vector<4x384xf32>
    %54 = vector.shape_cast %51 : vector<4x384xf32> to vector<1x4x384xf32>
    tpu.vector_store %arg7[%c0_24, %c0_25, %c0_26], %54 {strides = array<i32>} : memref<1x4x384xf32, #tpu.memory_space<vmem>>, vector<1x4x384xf32>,
    return
  }
  func.func @transform_0(%arg0: i32, %arg1: i32) -> (i32, i32, i32) {
    %c0_i32 = arith.constant 0 : i32
    %c0_i32_0 = arith.constant 0 : i32
    %c0_i32_1 = arith.constant 0 : i32
    return %arg0, %c0_i32, %c0_i32_0 : i32, i32, i32
  }
  func.func @transform_1(%arg0: i32, %arg1: i32) -> (i32, i32) {
    %c0_i32 = arith.constant 0 : i32
    %c0_i32_0 = arith.constant 0 : i32
    %c0_i32_1 = arith.constant 0 : i32
    return %c0_i32, %c0_i32_0 : i32, i32
  }
  func.func @transform_2(%arg0: i32, %arg1: i32) -> (i32, i32) {
    %c0_i32 = arith.constant 0 : i32
    %c0_i32_0 = arith.constant 0 : i32
    %c0_i32_1 = arith.constant 0 : i32
    return %c0_i32, %c0_i32_0 : i32, i32
  }
  func.func @transform_3(%arg0: i32, %arg1: i32) -> (i32, i32) {
    %c0_i32 = arith.constant 0 : i32
    %c0_i32_0 = arith.constant 0 : i32
    %c0_i32_1 = arith.constant 0 : i32
    return %c0_i32, %c0_i32_0 : i32, i32
  }
  func.func @transform_4(%arg0: i32, %arg1: i32) -> (i32, i32) {
    %c0_i32 = arith.constant 0 : i32
    %c0_i32_0 = arith.constant 0 : i32
    %c0_i32_1 = arith.constant 0 : i32
    return %c0_i32, %c0_i32_0 : i32, i32
  }
  func.func @transform_5(%arg0: i32, %arg1: i32) -> (i32, i32, i32) {
    %c0_i32 = arith.constant 0 : i32
    %c0_i32_0 = arith.constant 0 : i32
    return %arg0, %c0_i32, %arg1 : i32, i32, i32
  }
}

</mosaic_0001>

<llo_original>
// kernel: onlysup_forward.1
$region0: #{onlysup_forward.1}
  #allocation0 [shape = 'u32[]', space=smem, size = 0x4, offset = 0x4, fixed_abs, tag = 'smem constant byte address 0x4 - core index']
  #allocation1 [shape = 'u32[144,128]{1,0:T(1,128)}', space=vmem, size = 0x12000, scoped, tag = 'internal scratch']
  #allocation2 [shape = 'f32[36,384]{1,0:T(8,128)}', space=vmem, size = 0xf000, scoped, tag = 'scratch operand']
  %s0 = inlined_call_operand.vmem [shape: bf16[2,4,432], index: 0, kind: input, shape index: {}]
  %s1 = inlined_call_operand.vmem [shape: bf16[32,36], index: 1, kind: input, shape index: {}]
  %s2 = inlined_call_operand.vmem [shape: f32[32,1], index: 2, kind: input, shape index: {}]
  %s3 = inlined_call_operand.vmem [shape: bf16[4,32], index: 3, kind: input, shape index: {}]
  %s4 = inlined_call_operand.vmem [shape: f32[4,1], index: 4, kind: input, shape index: {}]
  %s5 = inlined_call_operand.vmem [shape: f32[2,4,384], index: 5, kind: output, shape index: {}]
  %s6 = sld [smem:[#allocation0]]
  $region53: #{onlysup_forward.1} parent=0
    _
  %s8 = ssub.s32 1, %s6
  %s9 = scalar_select 0, %s8, %s6
  loop: start=0, step=1, limit=4
  $region2: #{onlysup_forward.1} parent=0 // loop_pre_header
    _
  $region3: #{onlysup_forward.1} parent=0 // loop_header
    %s11 = sphi 0, %s15
    %p12 = scmp.ge.s32.totalorder %s11, 4
    %s18 = sphi 0, %s30
    %s19 = sphi 0, %s26
    %s20 = sphi 0, %s18
    %s21 = sphi 0, %s19
    %s22 = sphi 0, %s20
    %s23 = sphi 0, %s21
    %s33 = sphi 0, %s35
    %s36 = sphi 0, %s33
    %s37 = sphi 0, %s36
    %s53 = sphi 0, %s37
    %s57 = sphi 0, %s57
    %s59 = sphi 0, %s57
    %s60 = sphi 0, %s59
    %s74 = sphi 0, %s60
    %s78 = sphi 0, %s78
    %s80 = sphi 0, %s78
    %s81 = sphi 0, %s80
    %s95 = sphi 0, %s81
    %s99 = sphi 0, %s99
    %s101 = sphi 0, %s99
    %s102 = sphi 0, %s101
    %s116 = sphi 0, %s102
    %s120 = sphi 0, %s120
    %s122 = sphi 0, %s120
    %s123 = sphi 0, %s122
    %s137 = sphi 0, %s123
    %s145 = sphi 0, %s147
    %s148 = sphi 0, %s145
    %s149 = sphi 0, %s148
    %s165 = sphi 0, %s149
  $region4: #{onlysup_forward.1} parent=0 // loop_header_branch
    %14 = sbr.rel (%p12) target = $region8
  $region5: #{onlysup_forward.1} parent=0 // loop_body
    %s16 = ssub.s32 %s11, 1
    %s17 = ssub.s32 %s11, 2
    %s24 = sadd.s32 1, %s19
    %p25 = scmp.ge.s32.totalorder %s24, 1
    %s26 = scalar_select %p25, 0, %s24
    %s27 = sadd.s32 1, %s18
    %s28 = scalar_select %p25, %s27, %s18
    %p29 = scmp.ge.s32.totalorder %s28, 2
    %s30 = scalar_select %p29, 0, %s28
    %s31 = ssub.s32 %s18, %s30
    %p32 = scmp.eq.s32.totalorder %s31, 0
    %s34 = sadd.s32 %s33, 1
    %s35 = scalar_select %p32, %s33, %s34
    %p38 = pneg %p32
    %p39 = scmp.eq.s32.totalorder %s11, 1
    %p40 = por %p38, %p39
    %p41 = scmp.ne.s32.totalorder %s33, %s36
    %p42 = scmp.eq.s32.totalorder %s11, 0
    %p43 = por %p41, %p42
    %p44 = scmp.ne.s32.totalorder %s33, %s36
    %p45 = scmp.eq.s32.totalorder %s16, 1
    %p46 = por %p44, %p45
    %p47 = scmp.ne.s32.totalorder %s36, %s37
    %p48 = scmp.eq.s32.totalorder %s16, 0
    %p49 = por %p47, %p48
    %p50 = scmp.ne.s32.totalorder %s36, %s37
    %p51 = scmp.eq.s32.totalorder %s17, 1
    %p52 = por %p50, %p51
    %p54 = scmp.ne.s32.totalorder %s37, %s53
    %p55 = scmp.eq.s32.totalorder %s17, 0
    %p56 = por %p54, %p55
    %s58 = sadd.s32 %s57, 1
    %p61 = scmp.eq.s32.totalorder %s11, 1
    %p62 = scmp.ne.s32.totalorder %s57, %s59
    %p63 = scmp.eq.s32.totalorder %s11, 0
    %p64 = por %p62, %p63
    %p65 = scmp.ne.s32.totalorder %s57, %s59
    %p66 = scmp.eq.s32.totalorder %s16, 1
    %p67 = por %p65, %p66
    %p68 = scmp.ne.s32.totalorder %s59, %s60
    %p69 = scmp.eq.s32.totalorder %s16, 0
    %p70 = por %p68, %p69
    %p71 = scmp.ne.s32.totalorder %s59, %s60
    %p72 = scmp.eq.s32.totalorder %s17, 1
    %p73 = por %p71, %p72
    %p75 = scmp.ne.s32.totalorder %s60, %s74
    %p76 = scmp.eq.s32.totalorder %s17, 0
    %p77 = por %p75, %p76
    %s79 = sadd.s32 %s78, 1
    %p82 = scmp.eq.s32.totalorder %s11, 1
    %p83 = scmp.ne.s32.totalorder %s78, %s80
    %p84 = scmp.eq.s32.totalorder %s11, 0
    %p85 = por %p83, %p84
    %p86 = scmp.ne.s32.totalorder %s78, %s80
    %p87 = scmp.eq.s32.totalorder %s16, 1
    %p88 = por %p86, %p87
    %p89 = scmp.ne.s32.totalorder %s80, %s81
    %p90 = scmp.eq.s32.totalorder %s16, 0
    %p91 = por %p89, %p90
    %p92 = scmp.ne.s32.totalorder %s80, %s81
    %p93 = scmp.eq.s32.totalorder %s17, 1
    %p94 = por %p92, %p93
    %p96 = scmp.ne.s32.totalorder %s81, %s95
    %p97 = scmp.eq.s32.totalorder %s17, 0
    %p98 = por %p96, %p97
    %s100 = sadd.s32 %s99, 1
    %p103 = scmp.eq.s32.totalorder %s11, 1
    %p104 = scmp.ne.s32.totalorder %s99, %s101
    %p105 = scmp.eq.s32.totalorder %s11, 0
    %p106 = por %p104, %p105
    %p107 = scmp.ne.s32.totalorder %s99, %s101
    %p108 = scmp.eq.s32.totalorder %s16, 1
    %p109 = por %p107, %p108
    %p110 = scmp.ne.s32.totalorder %s101, %s102
    %p111 = scmp.eq.s32.totalorder %s16, 0
    %p112 = por %p110, %p111
    %p113 = scmp.ne.s32.totalorder %s101, %s102
    %p114 = scmp.eq.s32.totalorder %s17, 1
    %p115 = por %p113, %p114
    %p117 = scmp.ne.s32.totalorder %s102, %s116
    %p118 = scmp.eq.s32.totalorder %s17, 0
    %p119 = por %p117, %p118
    %s121 = sadd.s32 %s120, 1
    %p124 = scmp.eq.s32.totalorder %s11, 1
    %p125 = scmp.ne.s32.totalorder %s120, %s122
    %p126 = scmp.eq.s32.totalorder %s11, 0
    %p127 = por %p125, %p126
    %p128 = scmp.ne.s32.totalorder %s120, %s122
    %p129 = scmp.eq.s32.totalorder %s16, 1
    %p130 = por %p128, %p129
    %p131 = scmp.ne.s32.totalorder %s122, %s123
    %p132 = scmp.eq.s32.totalorder %s16, 0
    %p133 = por %p131, %p132
    %p134 = scmp.ne.s32.totalorder %s122, %s123
    %p135 = scmp.eq.s32.totalorder %s17, 1
    %p136 = por %p134, %p135
    %p138 = scmp.ne.s32.totalorder %s123, %s137
    %p139 = scmp.eq.s32.totalorder %s17, 0
    %p140 = por %p138, %p139
    %s141 = ssub.s32 %s18, %s30
    %s142 = ssub.s32 %s19, %s26
    %s143 = sor.u32 %s141, %s142
    %p144 = scmp.eq.s32.totalorder %s143, 0
    %s146 = sadd.s32 %s145, 1
    %s147 = scalar_select %p144, %s145, %s146
    %p150 = pneg %p144
    %p151 = scmp.eq.s32.totalorder %s11, 1
    %p152 = por %p150, %p151
    %p153 = scmp.ne.s32.totalorder %s145, %s148
    %p154 = scmp.eq.s32.totalorder %s11, 0
    %p155 = por %p153, %p154
    %p156 = scmp.ne.s32.totalorder %s145, %s148
    %p157 = scmp.eq.s32.totalorder %s16, 1
    %p158 = por %p156, %p157
    %p159 = scmp.ne.s32.totalorder %s148, %s149
    %p160 = scmp.eq.s32.totalorder %s16, 0
    %p161 = por %p159, %p160
    %p162 = scmp.ne.s32.totalorder %s148, %s149
    %p163 = scmp.eq.s32.totalorder %s17, 1
    %p164 = por %p162, %p163
    %p166 = scmp.ne.s32.totalorder %s149, %s165
    %p167 = scmp.eq.s32.totalorder %s17, 0
    %p168 = por %p166, %p167
    %p169 = scmp.le.s32.totalorder 1, %s11
    %p170 = scmp.lt.s32.totalorder %s11, 3
    %p171 = pnand %p169, %p170
    %p172 = pneg %p171
    // Predicated region
    $region9: #{onlysup_forward.1} parent=5 // pred_check
      _
    $region10: #{onlysup_forward.1} parent=5 // pred_check_branch
      %174 = sbr.rel (%p171) target = $region12
    $region11: #{onlysup_forward.1} parent=5 // pred_region
      %s175 = ssub.s32 %s11, 1
      // Predicated region
      $region13: #{onlysup_forward.1} parent=11 // pred_check
        %p176 = pneg %p70
      $region14: #{onlysup_forward.1} parent=11 // pred_check_branch
        %178 = sbr.rel (%p176) target = $region16
      $region15: #{onlysup_forward.1} parent=11 // pred_region
        _
      $region16: #{onlysup_forward.1} parent=11 // pred_fallthru
        _
      // Predicated region
      $region17: #{onlysup_forward.1} parent=11 // pred_check
        %p179 = pneg %p91
      $region18: #{onlysup_forward.1} parent=11 // pred_check_branch
        %181 = sbr.rel (%p179) target = $region20
      $region19: #{onlysup_forward.1} parent=11 // pred_region
        _
      $region20: #{onlysup_forward.1} parent=11 // pred_fallthru
        _
      // Predicated region
      $region21: #{onlysup_forward.1} parent=11 // pred_check
        %p182 = pneg %p112
      $region22: #{onlysup_forward.1} parent=11 // pred_check_branch
        %184 = sbr.rel (%p182) target = $region24
      $region23: #{onlysup_forward.1} parent=11 // pred_region
        _
      $region24: #{onlysup_forward.1} parent=11 // pred_fallthru
        _
      // Predicated region
      $region25: #{onlysup_forward.1} parent=11 // pred_check
        %p185 = pneg %p133
      $region26: #{onlysup_forward.1} parent=11 // pred_check_branch
        %187 = sbr.rel (%p185) target = $region28
      $region27: #{onlysup_forward.1} parent=11 // pred_region
        _
      $region28: #{onlysup_forward.1} parent=11 // pred_fallthru
        _
    $region12: #{onlysup_forward.1} parent=5 // pred_fallthru
      _
    %p188 = scmp.lt.s32.totalorder %s11, 2
    // Predicated region
    $region29: #{onlysup_forward.1} parent=5 // pred_check
      %p189 = pneg %p188
    $region30: #{onlysup_forward.1} parent=5 // pred_check_branch
      %191 = sbr.rel (%p189) target = $region32
    $region31: #{onlysup_forward.1} parent=5 // pred_region
      // Predicated region
      $region33: #{onlysup_forward.1} parent=31 // pred_check
        %p192 = pneg %p43
      $region34: #{onlysup_forward.1} parent=31 // pred_check_branch
        %194 = sbr.rel (%p192) target = $region36
      $region35: #{onlysup_forward.1} parent=31 // pred_region
        %p195 = scmp.lt.s32.totalorder %s18, 1
        %s196 = scalar_select %p195, %s18, 1
        %s197 = smul.addr %s196, 4
        %s198 = smul.addr %s197, 2
        %s199 = scalar_lea.vmem %s0, %s198
      $region36: #{onlysup_forward.1} parent=31 // pred_fallthru
        _
    $region32: #{onlysup_forward.1} parent=5 // pred_fallthru
      _
    %p200 = scmp.le.s32.totalorder 1, %s11
    %p201 = scmp.lt.s32.totalorder %s11, 3
    %p202 = pnand %p200, %p201
    %p203 = pneg %p202
    // Predicated region
    $region37: #{onlysup_forward.1} parent=5 // pred_check
      _
    $region38: #{onlysup_forward.1} parent=5 // pred_check_branch
      %205 = sbr.rel (%p202) target = $region40
    $region39: #{onlysup_forward.1} parent=5 // pred_region
      %s206 = ssub.s32 %s11, 1
      %p207 = scmp.lt.s32.totalorder %s20, 1
      %s208 = scalar_select %p207, %s20, 1
      %s209 = smul.addr %s208, 4
      %s210 = smul.addr %s209, 2
      %s211 = scalar_lea.vmem %s0, %s210
      %p212 = pneg %p49
      %p213 = pneg %p46
      %p214 = pneg %p70
      %p215 = pneg %p67
      %p216 = pneg %p91
      %p217 = pneg %p88
      %p218 = pneg %p112
      %p219 = pneg %p109
      %p220 = pneg %p133
      %p221 = pneg %p130
      %p222 = pneg %p161
      %p223 = pneg %p158
      %s224 = smul.u32 3, %s21
      %p225 = scmp.lt.s32.totalorder %s20, 1
      %s226 = scalar_select %p225, %s20, 1
      %p227 = scmp.lt.s32.totalorder %s224, 2
      %s228 = scalar_select %p227, %s224, 2
      %s229 = smul.addr %s226, 3
      %s230 = sadd.s32 %s228, %s229
      %s231 = smul.addr %s230, 4
      %s232 = scalar_lea.vmem %s5, %s231
      %p233 = scmp.lt.s32.totalorder %s20, 1
      %s234 = scalar_select %p233, %s20, 1
      %s235 = smul.addr %s234, 4
      %s236 = smul.addr %s235, 2
      %s237 = scalar_lea.vmem %s0, %s236
      %s238 = smul.u32 3, %s21
      %p239 = scmp.lt.s32.totalorder %s20, 1
      %s240 = scalar_select %p239, %s20, 1
      %p241 = scmp.lt.s32.totalorder %s238, 2
      %s242 = scalar_select %p241, %s238, 2
      %s243 = smul.addr %s240, 3
      %s244 = sadd.s32 %s242, %s243
      %s245 = smul.addr %s244, 4
      %s246 = scalar_lea.vmem %s5, %s245
      %s247 = smul.u32 3, %s21
      %s249 = smul.u32 %s21, 384
      %s250 = sshra.s32 %s249, 7
      %s251 = sand.u32 %s249, 127
      %s252 = smul.addr %s250, 2
      %s253 = scalar_lea.vmem %s237, %s252
      %v254 = vld [vmem:[%s253] sm:$0xff]
      %v255 = vunpack.c.l.bf16 %v254
      %v256 = vunpack.c.h.bf16 %v254
      %v259 = vcombine.high %v255, %v255
      %261 = vst [vmem:[#allocation2] sm:$0xf] %v255
      %262 = vst [vmem:[#allocation2 + $0x8] sm:$0xf] %v259
      %263 = vst [vmem:[#allocation2 + $0x10] sm:$0xf] %v256
      %v264 = vcombine.low %v255, %v255
      %v265 = vcombine.low %v256, %v256
      %266 = vrot.lane.b32.xlu0 %v264, 127
      %v267 = vpop.permute.xlu0 %266
      %268 = vrot.lane.b32.xlu0 %v255, 127
      %v269 = vpop.permute.xlu0 %268
      %270 = vrot.lane.b32.xlu0 %v265, 127
      %v271 = vpop.permute.xlu0 %270
      %272 = vrot.lane.b32.xlu0 %v256, 127
      %v273 = vpop.permute.xlu0 %272
      %vm274 = vcmask 1039360
      %v275 = vsel %vm274, %v267, %v269
      %v276 = vsel %vm274, %v269, %v271
      %v277 = vsel %vm274, %v271, %v273
      %281 = vst [vmem:[#allocation2] sm:$0xf0] %v275
      %282 = vst [vmem:[#allocation2 + $0x8] sm:$0xf0] %v276
      %283 = vst [vmem:[#allocation2 + $0x10] sm:$0xf0] %v277
      %v284 = vcombine.high %v256, %v256
      %285 = vrot.lane.b32.xlu0 %v255, 126
      %v286 = vpop.permute.xlu0 %285
      %287 = vrot.lane.b32.xlu0 %v259, 126
      %v288 = vpop.permute.xlu0 %287
      %289 = vrot.lane.b32.xlu0 %v256, 126
      %v290 = vpop.permute.xlu0 %289
      %291 = vrot.lane.b32.xlu0 %v284, 126
      %v292 = vpop.permute.xlu0 %291
      %vm293 = vcmask 1031168
      %v294 = vsel %vm293, %v286, %v288
      %v295 = vsel %vm293, %v288, %v290
      %v296 = vsel %vm293, %v290, %v292
      %300 = vst [vmem:[#allocation2 + $0x18] sm:$0xf] %v294
      %301 = vst [vmem:[#allocation2 + $0x20] sm:$0xf] %v295
      %302 = vst [vmem:[#allocation2 + $0x28] sm:$0xf] %v296
      %303 = vrot.lane.b32.xlu0 %v264, 110
      %v304 = vpop.permute.xlu0 %303
      %305 = vrot.lane.b32.xlu0 %v255, 110
      %v306 = vpop.permute.xlu0 %305
      %307 = vrot.lane.b32.xlu0 %v265, 110
      %v308 = vpop.permute.xlu0 %307
      %309 = vrot.lane.b32.xlu0 %v256, 110
      %v310 = vpop.permute.xlu0 %309
      %vm311 = vcmask 900096
      %v312 = vsel %vm311, %v304, %v306
      %v313 = vsel %vm311, %v306, %v308
      %v314 = vsel %vm311, %v308, %v310
      %318 = vst [vmem:[#allocation2 + $0x18] sm:$0xf0] %v312
      %319 = vst [vmem:[#allocation2 + $0x20] sm:$0xf0] %v313
      %320 = vst [vmem:[#allocation2 + $0x28] sm:$0xf0] %v314
      %321 = vrot.lane.b32.xlu0 %v255, 109
      %v322 = vpop.permute.xlu0 %321
      %323 = vrot.lane.b32.xlu0 %v259, 109
      %v324 = vpop.permute.xlu0 %323
      %325 = vrot.lane.b32.xlu0 %v256, 109
      %v326 = vpop.permute.xlu0 %325
      %327 = vrot.lane.b32.xlu0 %v284, 109
      %v328 = vpop.permute.xlu0 %327
      %vm329 = vcmask 891904
      %v330 = vsel %vm329, %v322, %v324
      %v331 = vsel %vm329, %v324, %v326
      %v332 = vsel %vm329, %v326, %v328
      %336 = vst [vmem:[#allocation2 + $0x30] sm:$0xf] %v330
      %337 = vst [vmem:[#allocation2 + $0x38] sm:$0xf] %v331
      %338 = vst [vmem:[#allocation2 + $0x40] sm:$0xf] %v332
      %339 = vrot.lane.b32.xlu0 %v264, 108
      %v340 = vpop.permute.xlu0 %339
      %341 = vrot.lane.b32.xlu0 %v255, 108
      %v342 = vpop.permute.xlu0 %341
      %343 = vrot.lane.b32.xlu0 %v265, 108
      %v344 = vpop.permute.xlu0 %343
      %345 = vrot.lane.b32.xlu0 %v256, 108
      %v346 = vpop.permute.xlu0 %345
      %vm347 = vcmask 883712
      %v348 = vsel %vm347, %v340, %v342
      %v349 = vsel %vm347, %v342, %v344
      %v350 = vsel %vm347, %v344, %v346
      %354 = vst [vmem:[#allocation2 + $0x30] sm:$0xf0] %v348
      %355 = vst [vmem:[#allocation2 + $0x38] sm:$0xf0] %v349
      %356 = vst [vmem:[#allocation2 + $0x40] sm:$0xf0] %v350
      %357 = vrot.lane.b32.xlu0 %v255, 92
      %v358 = vpop.permute.xlu0 %357
      %359 = vrot.lane.b32.xlu0 %v259, 92
      %v360 = vpop.permute.xlu0 %359
      %361 = vrot.lane.b32.xlu0 %v256, 92
      %v362 = vpop.permute.xlu0 %361
      %363 = vrot.lane.b32.xlu0 %v284, 92
      %v364 = vpop.permute.xlu0 %363
      %vm365 = vcmask 752640
      %v366 = vsel %vm365, %v358, %v360
      %v367 = vsel %vm365, %v360, %v362
      %v368 = vsel %vm365, %v362, %v364
      %372 = vst [vmem:[#allocation2 + $0x48] sm:$0xf] %v366
      %373 = vst [vmem:[#allocation2 + $0x50] sm:$0xf] %v367
      %374 = vst [vmem:[#allocation2 + $0x58] sm:$0xf] %v368
      %375 = vrot.lane.b32.xlu0 %v264, 91
      %v376 = vpop.permute.xlu0 %375
      %377 = vrot.lane.b32.xlu0 %v255, 91
      %v378 = vpop.permute.xlu0 %377
      %379 = vrot.lane.b32.xlu0 %v265, 91
      %v380 = vpop.permute.xlu0 %379
      %381 = vrot.lane.b32.xlu0 %v256, 91
      %v382 = vpop.permute.xlu0 %381
      %vm383 = vcmask 744448
      %v384 = vsel %vm383, %v376, %v378
      %v385 = vsel %vm383, %v378, %v380
      %v386 = vsel %vm383, %v380, %v382
      %390 = vst [vmem:[#allocation2 + $0x48] sm:$0xf0] %v384
      %391 = vst [vmem:[#allocation2 + $0x50] sm:$0xf0] %v385
      %392 = vst [vmem:[#allocation2 + $0x58] sm:$0xf0] %v386
      %393 = vrot.lane.b32.xlu0 %v255, 90
      %v394 = vpop.permute.xlu0 %393
      %395 = vrot.lane.b32.xlu0 %v259, 90
      %v396 = vpop.permute.xlu0 %395
      %397 = vrot.lane.b32.xlu0 %v256, 90
      %v398 = vpop.permute.xlu0 %397
      %399 = vrot.lane.b32.xlu0 %v284, 90
      %v400 = vpop.permute.xlu0 %399
      %vm401 = vcmask 736256
      %v402 = vsel %vm401, %v394, %v396
      %v403 = vsel %vm401, %v396, %v398
      %v404 = vsel %vm401, %v398, %v400
      %408 = vst [vmem:[#allocation2 + $0x60] sm:$0xf] %v402
      %409 = vst [vmem:[#allocation2 + $0x68] sm:$0xf] %v403
      %410 = vst [vmem:[#allocation2 + $0x70] sm:$0xf] %v404
      %v411 = vld [vmem:[%s1] sm:$0xf]
      %v412 = vld [vmem:[%s1 + $0x4] sm:$0xf]
      %v413 = vld [vmem:[%s1 + $0x8] sm:$0xf]
      %v414 = vld [vmem:[%s1 + $0xc] sm:$0xf]
      %v415 = vld [vmem:[#allocation2] sm:$0xff]
      %v416 = vld [vmem:[#allocation2 + $0x8] sm:$0xff]
      %v417 = vld [vmem:[#allocation2 + $0x10] sm:$0xff]
      %v418 = vld [vmem:[#allocation2 + $0x18] sm:$0xff]
      %v419 = vld [vmem:[#allocation2 + $0x20] sm:$0xff]
      %v420 = vld [vmem:[#allocation2 + $0x28] sm:$0xff]
      %v421 = vld [vmem:[#allocation2 + $0x30] sm:$0xff]
      %v422 = vld [vmem:[#allocation2 + $0x38] sm:$0xff]
      %v423 = vld [vmem:[#allocation2 + $0x40] sm:$0xff]
      %v424 = vld [vmem:[#allocation2 + $0x48] sm:$0xff]
      %v425 = vld [vmem:[#allocation2 + $0x50] sm:$0xff]
      %v426 = vld [vmem:[#allocation2 + $0x58] sm:$0xff]
      %v427 = vld [vmem:[#allocation2 + $0x60] sm:$0xf]
      %v428 = vld [vmem:[#allocation2 + $0x68] sm:$0xf]
      %v429 = vld [vmem:[#allocation2 + $0x70] sm:$0xf]
      %v430 = vpack.c.bf16 %v418, %v415
      %v431 = vpack.c.bf16 %v419, %v416
      %v432 = vpack.c.bf16 %v420, %v417
      %v433 = vpack.c.bf16 %v424, %v421
      %v434 = vpack.c.bf16 %v425, %v422
      %v435 = vpack.c.bf16 %v426, %v423
      %v436 = vpack.c.bf16 %v427, %v427
      %v437 = vpack.c.bf16 %v428, %v428
      %v438 = vpack.c.bf16 %v429, %v429
      %v439 = vld [vmem:[%s2] sm:$0xff]
      %v440 = vld [vmem:[%s2 + $0x8] sm:$0xff]
      %v441 = vld [vmem:[%s2 + $0x10] sm:$0xff]
      %v442 = vld [vmem:[%s2 + $0x18] sm:$0xff]
      %444 = vset.pattern.permute.xlu0 0
      %445 = vperm.xlu0 %444, %v439
      %v446 = vpop.permute.xlu0 %445
      %449 = vset.pattern.permute.xlu0 0
      %450 = vperm.xlu0 %449, %v440
      %v451 = vpop.permute.xlu0 %450
      %454 = vset.pattern.permute.xlu0 0
      %455 = vperm.xlu0 %454, %v441
      %v456 = vpop.permute.xlu0 %455
      %459 = vset.pattern.permute.xlu0 0
      %460 = vperm.xlu0 %459, %v442
      %v461 = vpop.permute.xlu0 %460
      %v467 = vunpack.c.l.b16 %v411
      %v468 = vunpack.c.l.b16 %v412
      %v469 = vunpack.c.l.b16 %v413
      %v470 = vunpack.c.l.b16 %v414
      %v471 = vpack.c.b16 %v468, %v467
      %v472 = vpack.c.b16 %v470, %v469
      %vm473 = vcmask 293888
      %v475 = vsel %vm473, %v471, 0
      %v478 = vsel %vm473, %v472, 0
      %vm480 = vcmask 1041408
      %v482 = vsel %vm480, %v436, 0
      %v485 = vsel %vm480, %v437, 0
      %v488 = vsel %vm480, %v438, 0
      %490 = vmatprep.subr.bf16.mxu0 0
      %491 = vmatpush1.bf16.msra.mxu0 0
      %492 = vmatprep.subr.bf16.mxu0 0
      %493 = vmatpush1.bf16.msra.mxu0 0
      %494 = vmatprep.subr.bf16.mxu0 0
      %495 = vmatpush1.bf16.msra.mxu0 0
      %496 = vmatprep.subr.bf16.mxu0 0
      %497 = vmatpush1.bf16.msra.mxu0 0
      %498 = vmatprep.subr.bf16.mxu0 0
      %499 = vmatpush1.bf16.msra.mxu0 0
      %500 = vmatprep.subr.bf16.mxu0 %v485
      %501 = vmatpush1.bf16.msra.mxu0 %v482
      %502 = vmatprep.subr.bf16.mxu0 %v434
      %503 = vmatpush1.bf16.msra.mxu0 %v433
      %504 = vmatprep.subr.bf16.mxu0 %v431
      %505 = vmatpush1.bf16.msra.mxu0 %v430
      %506 = vmatprep.subr.bf16.mxu0 0
      %507 = vmatpush2.bf16.msra.mxu0 0
      %508 = vmatprep.subr.bf16.mxu0 0
      %509 = vmatpush2.bf16.msra.mxu0 0
      %510 = vmatprep.subr.bf16.mxu0 0
      %511 = vmatpush2.bf16.msra.mxu0 0
      %512 = vmatprep.subr.bf16.mxu0 0
      %513 = vmatpush2.bf16.msra.mxu0 0
      %514 = vmatprep.subr.bf16.mxu0 0
      %515 = vmatpush2.bf16.msra.mxu0 0
      %516 = vmatprep.subr.bf16.mxu0 0
      %517 = vmatpush2.bf16.msra.mxu0 0
      %518 = vmatprep.subr.bf16.mxu0 0
      %519 = vmatpush2.bf16.msra.mxu0 0
      %520 = vmatprep.subr.bf16.mxu0 0
      %521 = vmatpush2.bf16.msra.mxu0 0
      %522 = vmatprep.mubr.bf16.mxu0 0
      %523 = vmatmul.mubr.bf16.gmra.mxu0 %v475
      %v524 = vpop.f32.mrf.mxu0
      %v525 = vadd.f32 %v446, %v524
      %v526 = vpop.f32.mrf.mxu0
      %v527 = vadd.f32 %v446, %v526
      %v528 = vpop.f32.mrf.mxu0
      %v529 = vadd.f32 %v451, %v528
      %v530 = vpop.f32.mrf.mxu0
      %v531 = vadd.f32 %v451, %v530
      %532 = vmatprep.mubr.bf16.mxu0 0
      %533 = vmatmul.mubr.bf16.gmra.mxu0 %v478
      %v534 = vpop.f32.mrf.mxu0
      %v535 = vadd.f32 %v456, %v534
      %v536 = vpop.f32.mrf.mxu0
      %v537 = vadd.f32 %v456, %v536
      %v538 = vpop.f32.mrf.mxu0
      %v539 = vadd.f32 %v461, %v538
      %v540 = vpop.f32.mrf.mxu0
      %v541 = vadd.f32 %v461, %v540
      %542 = vdwg.mxu0
      %543 = vmatprep.subr.bf16.mxu0 0
      %544 = vmatpush1.bf16.msra.mxu0 0
      %545 = vmatprep.subr.bf16.mxu0 0
      %546 = vmatpush1.bf16.msra.mxu0 0
      %547 = vmatprep.subr.bf16.mxu0 0
      %548 = vmatpush1.bf16.msra.mxu0 0
      %549 = vmatprep.subr.bf16.mxu0 0
      %550 = vmatpush1.bf16.msra.mxu0 0
      %551 = vmatprep.subr.bf16.mxu0 0
      %552 = vmatpush1.bf16.msra.mxu0 0
      %553 = vmatprep.subr.bf16.mxu0 0
      %554 = vmatpush1.bf16.msra.mxu0 %v488
      %555 = vmatprep.subr.bf16.mxu0 0
      %556 = vmatpush1.bf16.msra.mxu0 %v435
      %557 = vmatprep.subr.bf16.mxu0 0
      %558 = vmatpush1.bf16.msra.mxu0 %v432
      %559 = vmatprep.subr.bf16.mxu0 0
      %560 = vmatpush2.bf16.msra.mxu0 0
      %561 = vmatprep.subr.bf16.mxu0 0
      %562 = vmatpush2.bf16.msra.mxu0 0
      %563 = vmatprep.subr.bf16.mxu0 0
      %564 = vmatpush2.bf16.msra.mxu0 0
      %565 = vmatprep.subr.bf16.mxu0 0
      %566 = vmatpush2.bf16.msra.mxu0 0
      %567 = vmatprep.subr.bf16.mxu0 0
      %568 = vmatpush2.bf16.msra.mxu0 0
      %569 = vmatprep.subr.bf16.mxu0 0
      %570 = vmatpush2.bf16.msra.mxu0 0
      %571 = vmatprep.subr.bf16.mxu0 0
      %572 = vmatpush2.bf16.msra.mxu0 0
      %573 = vmatprep.subr.bf16.mxu0 0
      %574 = vmatpush2.bf16.msra.mxu0 0
      %575 = vmatprep.mubr.bf16.mxu0 0
      %576 = vmatmul.mubr.bf16.gmra.mxu0 %v475
      %v577 = vpop.f32.mrf.mxu0
      %v578 = vadd.f32 %v446, %v577
      %v579 = vpop.f32.mrf.mxu0
      %v580 = vpop.f32.mrf.mxu0
      %v581 = vadd.f32 %v451, %v580
      %v582 = vpop.f32.mrf.mxu0
      %583 = vmatprep.mubr.bf16.mxu0 0
      %584 = vmatmul.mubr.bf16.gmra.mxu0 %v478
      %v585 = vpop.f32.mrf.mxu0
      %v586 = vadd.f32 %v456, %v585
      %v587 = vpop.f32.mrf.mxu0
      %v588 = vpop.f32.mrf.mxu0
      %v589 = vadd.f32 %v461, %v588
      %v590 = vpop.f32.mrf.mxu0
      %591 = vdwg.mxu0
      %v592 = vmax.f32 %v525, 0.0
      %v593 = vmax.f32 %v527, 0.0
      %v594 = vmax.f32 %v578, 0.0
      %v595 = vmax.f32 %v529, 0.0
      %v596 = vmax.f32 %v531, 0.0
      %v597 = vmax.f32 %v581, 0.0
      %v598 = vmax.f32 %v535, 0.0
      %v599 = vmax.f32 %v537, 0.0
      %v600 = vmax.f32 %v586, 0.0
      %v601 = vmax.f32 %v539, 0.0
      %v602 = vmax.f32 %v541, 0.0
      %v603 = vmax.f32 %v589, 0.0
      %v604 = vpack.c.bf16 %v595, %v592
      %v605 = vpack.c.bf16 %v596, %v593
      %v606 = vpack.c.bf16 %v597, %v594
      %v607 = vpack.c.bf16 %v601, %v598
      %v608 = vpack.c.bf16 %v602, %v599
      %v609 = vpack.c.bf16 %v603, %v600
      %v610 = vld [vmem:[%s3] sm:$0x3]
      %v611 = vld [vmem:[%s4] sm:$0xf]
      %613 = vset.pattern.permute.xlu0 0
      %614 = vperm.xlu0 %613, %v611
      %v615 = vpop.permute.xlu0 %614
      %vm617 = vcmask 261120
      %v619 = vsel %vm617, %v610, 0
      %621 = vmatprep.subr.bf16.mxu0 0
      %622 = vmatpush1.bf16.msra.mxu0 0
      %623 = vmatprep.subr.bf16.mxu0 0
      %624 = vmatpush1.bf16.msra.mxu0 0
      %625 = vmatprep.subr.bf16.mxu0 0
      %626 = vmatpush1.bf16.msra.mxu0 0
      %627 = vmatprep.subr.bf16.mxu0 0
      %628 = vmatpush1.bf16.msra.mxu0 0
      %629 = vmatprep.subr.bf16.mxu0 0
      %630 = vmatpush1.bf16.msra.mxu0 0
      %631 = vmatprep.subr.bf16.mxu0 0
      %632 = vmatpush1.bf16.msra.mxu0 0
      %633 = vmatprep.subr.bf16.mxu0 %v608
      %634 = vmatpush1.bf16.msra.mxu0 %v607
      %635 = vmatprep.subr.bf16.mxu0 %v605
      %636 = vmatpush1.bf16.msra.mxu0 %v604
      %637 = vmatprep.subr.bf16.mxu0 0
      %638 = vmatpush2.bf16.msra.mxu0 0
      %639 = vmatprep.subr.bf16.mxu0 0
      %640 = vmatpush2.bf16.msra.mxu0 0
      %641 = vmatprep.subr.bf16.mxu0 0
      %642 = vmatpush2.bf16.msra.mxu0 0
      %643 = vmatprep.subr.bf16.mxu0 0
      %644 = vmatpush2.bf16.msra.mxu0 0
      %645 = vmatprep.subr.bf16.mxu0 0
      %646 = vmatpush2.bf16.msra.mxu0 0
      %647 = vmatprep.subr.bf16.mxu0 0
      %648 = vmatpush2.bf16.msra.mxu0 0
      %649 = vmatprep.subr.bf16.mxu0 0
      %650 = vmatpush2.bf16.msra.mxu0 0
      %651 = vmatprep.subr.bf16.mxu0 0
      %652 = vmatpush2.bf16.msra.mxu0 0
      %653 = vmatprep.mubr.bf16.mxu0 0
      %654 = vmatmul.mubr.bf16.gmra.mxu0 %v619
      %v655 = vpop.f32.mrf.mxu0
      %v656 = vadd.f32 %v615, %v655
      %v657 = vpop.f32.mrf.mxu0
      %v658 = vadd.f32 %v615, %v657
      %v659 = vpop.f32.mrf.mxu0
      %v660 = vpop.f32.mrf.mxu0
      %661 = vdwg.mxu0
      %662 = vmatprep.subr.bf16.mxu0 0
      %663 = vmatpush1.bf16.msra.mxu0 0
      %664 = vmatprep.subr.bf16.mxu0 0
      %665 = vmatpush1.bf16.msra.mxu0 0
      %666 = vmatprep.subr.bf16.mxu0 0
      %667 = vmatpush1.bf16.msra.mxu0 0
      %668 = vmatprep.subr.bf16.mxu0 0
      %669 = vmatpush1.bf16.msra.mxu0 0
      %670 = vmatprep.subr.bf16.mxu0 0
      %671 = vmatpush1.bf16.msra.mxu0 0
      %672 = vmatprep.subr.bf16.mxu0 0
      %673 = vmatpush1.bf16.msra.mxu0 0
      %674 = vmatprep.subr.bf16.mxu0 0
      %675 = vmatpush1.bf16.msra.mxu0 %v609
      %676 = vmatprep.subr.bf16.mxu0 0
      %677 = vmatpush1.bf16.msra.mxu0 %v606
      %678 = vmatprep.subr.bf16.mxu0 0
      %679 = vmatpush2.bf16.msra.mxu0 0
      %680 = vmatprep.subr.bf16.mxu0 0
      %681 = vmatpush2.bf16.msra.mxu0 0
      %682 = vmatprep.subr.bf16.mxu0 0
      %683 = vmatpush2.bf16.msra.mxu0 0
      %684 = vmatprep.subr.bf16.mxu0 0
      %685 = vmatpush2.bf16.msra.mxu0 0
      %686 = vmatprep.subr.bf16.mxu0 0
      %687 = vmatpush2.bf16.msra.mxu0 0
      %688 = vmatprep.subr.bf16.mxu0 0
      %689 = vmatpush2.bf16.msra.mxu0 0
      %690 = vmatprep.subr.bf16.mxu0 0
      %691 = vmatpush2.bf16.msra.mxu0 0
      %692 = vmatprep.subr.bf16.mxu0 0
      %693 = vmatpush2.bf16.msra.mxu0 0
      %694 = vmatprep.mubr.bf16.mxu0 0
      %695 = vmatmul.mubr.bf16.gmra.mxu0 %v619
      %v696 = vpop.f32.mrf.mxu0
      %v697 = vadd.f32 %v615, %v696
      %v698 = vpop.f32.mrf.mxu0
      %v699 = vpop.f32.mrf.mxu0
      %v700 = vpop.f32.mrf.mxu0
      %701 = vdwg.mxu0
      %v702 = vxor.u32 %v656, 2147483648
      %v703 = vxor.u32 %v658, 2147483648
      %v704 = vxor.u32 %v697, 2147483648
      %v705 = vmul.f32 %v702, 1.442695
      %v706 = vpow.pop %v705
      %v707 = vmul.f32 %v703, 1.442695
      %v708 = vpow.pop %v707
      %v709 = vmul.f32 %v704, 1.442695
      %v710 = vpow.pop %v709
      %v711 = vadd.f32 %v706, 1.0
      %v712 = vadd.f32 %v708, 1.0
      %v713 = vadd.f32 %v710, 1.0
      %v714 = vrcp.pop %v711
      %v715 = vmul.f32 1.0, %v714
      %v716 = vrcp.pop %v712
      %v717 = vmul.f32 1.0, %v716
      %v718 = vrcp.pop %v713
      %v719 = vmul.f32 1.0, %v718
      %v722 = vcombine.low %v715, %v717
      %724 = vst [vmem:[%s246] sm:$0xff] %v722
      %725 = vst [vmem:[%s246 + $0x8] sm:$0xf] %v719
      %s726 = smul.u32 3, %s21
      %p727 = scmp.lt.s32.totalorder %s20, 1
      %s728 = scalar_select %p727, %s20, 1
      %p729 = scmp.lt.s32.totalorder %s726, 2
      %s730 = scalar_select %p729, %s726, 2
      %s731 = smul.addr %s728, 3
      %s732 = sadd.s32 %s730, %s731
      %s733 = smul.addr %s732, 4
      %s734 = scalar_lea.vmem %s5, %s733
      // Predicated region
      $region41: #{onlysup_forward.1} parent=39 // pred_check
        %p735 = pneg %p158
      $region42: #{onlysup_forward.1} parent=39 // pred_check_branch
        %737 = sbr.rel (%p735) target = $region44
      $region43: #{onlysup_forward.1} parent=39 // pred_region
        %s738 = smul.u32 3, %s21
      $region44: #{onlysup_forward.1} parent=39 // pred_fallthru
        _
    $region40: #{onlysup_forward.1} parent=5 // pred_fallthru
      _
    %p739 = scmp.le.s32.totalorder 2, %s11
    // Predicated region
    $region45: #{onlysup_forward.1} parent=5 // pred_check
      %p740 = pneg %p739
    $region46: #{onlysup_forward.1} parent=5 // pred_check_branch
      %742 = sbr.rel (%p740) target = $region48
    $region47: #{onlysup_forward.1} parent=5 // pred_region
      %s743 = ssub.s32 %s11, 2
      // Predicated region
      $region49: #{onlysup_forward.1} parent=47 // pred_check
        %p744 = pneg %p164
      $region50: #{onlysup_forward.1} parent=47 // pred_check_branch
        %746 = sbr.rel (%p744) target = $region52
      $region51: #{onlysup_forward.1} parent=47 // pred_region
        %s747 = smul.u32 3, %s23
        %p748 = scmp.lt.s32.totalorder %s22, 1
        %s749 = scalar_select %p748, %s22, 1
        %p750 = scmp.lt.s32.totalorder %s747, 2
        %s751 = scalar_select %p750, %s747, 2
        %s752 = smul.addr %s749, 3
        %s753 = sadd.s32 %s751, %s752
        %s754 = smul.addr %s753, 4
        %s755 = scalar_lea.vmem %s5, %s754
      $region52: #{onlysup_forward.1} parent=47 // pred_fallthru
        _
    $region48: #{onlysup_forward.1} parent=5 // pred_fallthru
      _
  $region6: #{onlysup_forward.1} parent=0 // loop_footer
    %s15 = sadd.s32 1, %s11
  $region7: #{onlysup_forward.1} parent=0 // loop_footer_branch
    %10 = sbr.rel target = $region3
  $region8: #{onlysup_forward.1} parent=0 // loop_exit
    _

</llo_original>
